<compile_context>
chip_gen: v6e
topology: v6e:2x2x1
jax: 0.10.0
libtpu: 0.0.40
codegen_flags: <defaults>
</compile_context>

<pallas_src>
import functools

import jax
import jax.numpy as jnp
from jax.experimental import pallas as pl
from jax.experimental.pallas import tpu as pltpu


def _vq_kernel(x_ref, e_ref, esq_ref,
               q_ref, enc_ref, loss_ref, perp_ref,
               sqerr_acc, cnt_acc,
               *, commitment_cost, total_rows):
    """One tile of flattened rows per grid step.

    x_ref    : (TN, D)  flattened inputs (rows = pixels, lanes = channels)
    e_ref    : (K, D)   codebook
    esq_ref  : (1, K)   precomputed sum(E^2, axis=1)
    q_ref    : (TN, D)  straight-through quantized output
    enc_ref  : (TN, K)  one-hot encodings
    loss_ref : (1, 1)   scalar loss          (written on last step)
    perp_ref : (1, 1)   scalar perplexity    (written on last step)
    sqerr_acc: VMEM (1, 1)  running sum of (q - x)^2
    cnt_acc  : VMEM (1, K)  running per-code selection counts
    """
    step = pl.program_id(0)

    @pl.when(step == 0)
    def _():
        sqerr_acc[...] = jnp.zeros_like(sqerr_acc)
        cnt_acc[...] = jnp.zeros_like(cnt_acc)

    x = x_ref[...].astype(jnp.float32)          # (TN, D)
    e = e_ref[...].astype(jnp.float32)          # (K, D)
    K = e.shape[0]

    # distances = |x|^2 + |E|^2 - 2 x.E^T  -- one MXU matmul, contracting D.
    x_sq = jnp.sum(x * x, axis=1, keepdims=True)                     # (TN, 1)
    cross = jax.lax.dot_general(
        x, e, (((1,), (1,)), ((), ())),
        preferred_element_type=jnp.float32)                          # (TN, K)
    dist = x_sq + esq_ref[...] - 2.0 * cross                         # (TN, K)

    # First-index argmin over the codebook (lane) axis, expressed with 2-D
    # lane reductions only: min distance -> tie mask -> min masked lane-iota.
    iota_k = jax.lax.broadcasted_iota(jnp.int32, dist.shape, 1)      # (TN, K)
    iota_f = iota_k.astype(jnp.float32)
    d_min = jnp.min(dist, axis=1, keepdims=True)                     # (TN, 1)
    idx_f = jnp.min(jnp.where(dist == d_min, iota_f, float(K)),
                    axis=1, keepdims=True)                           # (TN, 1)
    enc = (iota_f == idx_f).astype(jnp.float32)                      # (TN, K)

    # quantized = enc @ E  (matches PyTorch scatter_ + matmul); MXU, N = D.
    q = jnp.dot(enc, e, preferred_element_type=jnp.float32)          # (TN, D)

    enc_ref[...] = enc.astype(enc_ref.dtype)
    diff = q - x
    # Straight-through estimator: forward value is x + (q - x).
    q_ref[...] = (x + diff).astype(q_ref.dtype)

    sqerr_acc[...] += jnp.sum(diff * diff, axis=(0, 1), keepdims=True)
    cnt_acc[...] += jnp.sum(enc, axis=0, keepdims=True)

    @pl.when(step == pl.num_programs(0) - 1)
    def _():
        denom = float(total_rows * x.shape[1])
        mse = sqerr_acc[...] / denom                                 # (1, 1)
        # q_latent_loss + commitment_cost * e_latent_loss (same value fwd).
        loss_ref[...] = ((1.0 + commitment_cost) * mse).astype(loss_ref.dtype)
        avg = cnt_acc[...] / float(total_rows)                       # (1, K)
        ent = -jnp.sum(avg * jnp.log(avg + 1e-10), axis=1, keepdims=True)
        perp_ref[...] = jnp.exp(ent).astype(perp_ref.dtype)


def vector_quantizer_forward(x_nchw, embedding, commitment_cost=0.25):
    """x_nchw: (B, C, H, W) with C == embedding_dim; embedding: (K, D).

    Returns (loss, quantized_nchw, perplexity, encodings), like the PyTorch
    module's forward.
    """
    B, C, H, W = x_nchw.shape
    K, D = embedding.shape
    assert C == D, "channel dim must equal embedding_dim"

    N = B * H * W
    # Layout glue stays in the XLA wrapper: flatten to lane-dense (N, D).
    flat = jnp.transpose(x_nchw, (0, 2, 3, 1)).reshape(N, D)
    e_sq = jnp.sum(embedding.astype(jnp.float32) ** 2, axis=1).reshape(1, K)

    # Single pass over all rows at small sizes; tile rows only when N is large.
    tn = N if N <= 1024 else 1024
    assert N % tn == 0, "B*H*W must be a multiple of the row tile"
    grid = (N // tn,)

    kernel = functools.partial(
        _vq_kernel,
        commitment_cost=float(commitment_cost),
        total_rows=N,
    )

    quant_flat, encodings, loss, perplexity = pl.pallas_call(
        kernel,
        out_shape=(
            jax.ShapeDtypeStruct((N, D), x_nchw.dtype),    # quantized (flat)
            jax.ShapeDtypeStruct((N, K), jnp.float32),     # encodings (one-hot)
            jax.ShapeDtypeStruct((1, 1), jnp.float32),     # loss
            jax.ShapeDtypeStruct((1, 1), jnp.float32),     # perplexity
        ),
        grid_spec=pltpu.PrefetchScalarGridSpec(
            num_scalar_prefetch=0,
            grid=grid,
            in_specs=[
                pl.BlockSpec((tn, D), lambda i: (i, 0)),   # rows tiled
                pl.BlockSpec((K, D), lambda i: (0, 0)),    # full codebook
                pl.BlockSpec((1, K), lambda i: (0, 0)),    # |E|^2
            ],
            out_specs=(
                pl.BlockSpec((tn, D), lambda i: (i, 0)),
                pl.BlockSpec((tn, K), lambda i: (i, 0)),
                pl.BlockSpec((1, 1), lambda i: (0, 0)),
                pl.BlockSpec((1, 1), lambda i: (0, 0)),
            ),
            scratch_shapes=[
                pltpu.VMEM((1, 1), jnp.float32),   # running sum of sq error
                pltpu.VMEM((1, K), jnp.float32),   # running code counts
            ],
        ),
        compiler_params=pltpu.CompilerParams(
            # The row axis carries the loss/perplexity accumulators.
            dimension_semantics=("arbitrary",),
        ),
    )(flat, embedding, e_sq)

    quantized = jnp.transpose(quant_flat.reshape(B, H, W, D), (0, 3, 1, 2))
    return loss[0, 0], quantized, perplexity[0, 0], encodings


def _reference(x_nchw, embedding, commitment_cost=0.25):
    """Pure-JAX reference mirroring the PyTorch VectorQuantizer.forward."""
    x = jnp.transpose(x_nchw, (0, 2, 3, 1))
    flat = x.reshape(-1, embedding.shape[1])
    dist = (jnp.sum(flat ** 2, axis=1, keepdims=True)
            + jnp.sum(embedding ** 2, axis=1)
            - 2.0 * flat @ embedding.T)
    idx = jnp.argmin(dist, axis=1)
    enc = jax.nn.one_hot(idx, embedding.shape[0], dtype=jnp.float32)
    q = (enc @ embedding).reshape(x.shape)
    e_latent = jnp.mean((q - x) ** 2)                    # == q_latent fwd value
    loss = (1.0 + commitment_cost) * e_latent
    q_st = x + (q - x)                                   # straight-through fwd
    avg = jnp.mean(enc, axis=0)
    perplexity = jnp.exp(-jnp.sum(avg * jnp.log(avg + 1e-10)))
    return loss, jnp.transpose(q_st, (0, 3, 1, 2)), perplexity, enc


if __name__ == "__main__":
    # Small shapes consistent with the module (channels == embedding_dim);
    # D and K are multiples of 128 so every load/store is lane-dense.
    B, D, H, W = 2, 128, 8, 8
    K = 256
    CC = 0.25

    key = jax.random.PRNGKey(0)
    kx, ke = jax.random.split(key)
    x = jax.random.normal(kx, (B, D, H, W), dtype=jnp.float32)
    # Codebook with a wide spread keeps nearest-code decisions well separated
    # from f32 rounding in this synthetic test (the module's +/-1/K init also
    # works, it is just more tie-prone with random data).
    emb = jax.random.uniform(ke, (K, D), minval=-0.5, maxval=0.5,
                             dtype=jnp.float32)

    loss, quant, perp, enc = jax.block_until_ready(
        vector_quantizer_forward(x, emb, CC))
    r_loss, r_quant, r_perp, r_enc = jax.block_until_ready(
        _reference(x, emb, CC))

    assert quant.shape == (B, D, H, W)
    assert enc.shape == (B * H * W, K)
    assert jnp.array_equal(enc, r_enc), "encodings mismatch vs reference"
    assert jnp.allclose(quant, r_quant, atol=1e-5, rtol=1e-5), "quantized mismatch"
    assert jnp.allclose(loss, r_loss, atol=1e-4, rtol=1e-4), "loss mismatch"
    assert jnp.allclose(perp, r_perp, atol=1e-3, rtol=1e-4), "perplexity mismatch"
    print("KERNEL_OK")
</pallas_src>

<mosaic_0001>
module attributes {stable_mosaic.version = 11 : i64} {
  func.func @_vq_kernel(%arg0: i32, %arg1: memref<128x128xf32, #tpu.memory_space<vmem>>, %arg2: memref<256x128xf32, #tpu.memory_space<vmem>>, %arg3: memref<1x256xf32, #tpu.memory_space<vmem>>, %arg4: memref<128x128xf32, #tpu.memory_space<vmem>>, %arg5: memref<128x256xf32, #tpu.memory_space<vmem>>, %arg6: memref<1x1xf32, #tpu.memory_space<vmem>>, %arg7: memref<1x1xf32, #tpu.memory_space<vmem>>, %arg8: memref<1x1xf32, #tpu.memory_space<vmem>>, %arg9: memref<1x256xf32, #tpu.memory_space<vmem>>) attributes {dimension_semantics = [#tpu.dimension_semantics<arbitrary>], iteration_bounds = array<i64: 1>, scalar_prefetch = 0 : i64, scratch_operands = 2 : i64, tpu.core_type = #tpu.core_type<tc>, window_params = [{transform_indices = @transform_0, window_bounds = array<i64: 128, 128>}, {pipeline_mode = #tpu.pipeline_mode<synchronous>, transform_indices = @transform_1, window_bounds = array<i64: 256, 128>}, {pipeline_mode = #tpu.pipeline_mode<synchronous>, transform_indices = @transform_2, window_bounds = array<i64: 1, 256>}, {transform_indices = @transform_3, window_bounds = array<i64: 128, 128>}, {transform_indices = @transform_4, window_bounds = array<i64: 128, 256>}, {pipeline_mode = #tpu.pipeline_mode<synchronous>, transform_indices = @transform_5, window_bounds = array<i64: 1, 1>}, {pipeline_mode = #tpu.pipeline_mode<synchronous>, transform_indices = @transform_6, window_bounds = array<i64: 1, 1>}]} {
    %c0_i32 = arith.constant 0 : i32
    %0 = arith.cmpi eq, %arg0, %c0_i32 : i32
    %1 = arith.extui %0 : i1 to i32
    %c0_i32_0 = arith.constant 0 : i32
    %2 = arith.cmpi ne, %1, %c0_i32_0 : i32
    scf.if %2 {
      %cst_28 = arith.constant 0.000000e+00 : f32
      %52 = vector.broadcast %cst_28 : f32 to vector<1x1xf32>
      %c0_29 = arith.constant 0 : index
      %c0_30 = arith.constant 0 : index
      %53 = vector.load %arg8[%c0_29, %c0_30] : memref<1x1xf32, #tpu.memory_space<vmem>>, vector<1x1xf32>
      tpu.vector_store %arg8[%c0_29, %c0_30], %52 {strides = array<i32>} : memref<1x1xf32, #tpu.memory_space<vmem>>, vector<1x1xf32>,
      %cst_31 = arith.constant 0.000000e+00 : f32
      %54 = vector.broadcast %cst_31 : f32 to vector<1x256xf32>
      %c0_32 = arith.constant 0 : index
      %c0_33 = arith.constant 0 : index
      %55 = vector.load %arg9[%c0_32, %c0_33] : memref<1x256xf32, #tpu.memory_space<vmem>>, vector<1x256xf32>
      tpu.vector_store %arg9[%c0_32, %c0_33], %54 {strides = array<i32>} : memref<1x256xf32, #tpu.memory_space<vmem>>, vector<1x256xf32>,
    } else {
    }
    %c0 = arith.constant 0 : index
    %c0_1 = arith.constant 0 : index
    %3 = vector.load %arg1[%c0, %c0_1] : memref<128x128xf32, #tpu.memory_space<vmem>>, vector<128x128xf32>
    %c0_2 = arith.constant 0 : index
    %c0_3 = arith.constant 0 : index
    %4 = vector.load %arg2[%c0_2, %c0_3] : memref<256x128xf32, #tpu.memory_space<vmem>>, vector<256x128xf32>
    %5 = arith.mulf %3, %3 : vector<128x128xf32>
    %cst = arith.constant dense<0.000000e+00> : vector<128xf32>
    %6 = vector.multi_reduction <add>, %5, %cst [1] : vector<128x128xf32> to vector<128xf32>
    %7 = vector.shape_cast %6 : vector<128xf32> to vector<128x1xf32>
    %cst_4 = arith.constant dense<0.000000e+00> : vector<128x256xf32>
    %8 = tpu.matmul %3, %4, %cst_4 {dimension_numbers = #tpu.dot_dimension_numbers<[1], [1], [0], [0], [0, 0, 1, 0], [], []>} : vector<128x128xf32>, vector<256x128xf32>, vector<128x256xf32> -> vector<128x256xf32>
    %c0_5 = arith.constant 0 : index
    %c0_6 = arith.constant 0 : index
    %9 = vector.load %arg3[%c0_5, %c0_6] : memref<1x256xf32, #tpu.memory_space<vmem>>, vector<1x256xf32>
    %10 = vector.broadcast %7 : vector<128x1xf32> to vector<128x256xf32>
    %11 = vector.broadcast %9 : vector<1x256xf32> to vector<128x256xf32>
    %12 = arith.addf %10, %11 : vector<128x256xf32>
    %cst_7 = arith.constant 2.000000e+00 : f32
    %13 = vector.broadcast %cst_7 : f32 to vector<128x256xf32>
    %14 = arith.mulf %13, %8 : vector<128x256xf32>
    %15 = arith.subf %12, %14 : vector<128x256xf32>
    %16 = tpu.iota {dimensions = array<i32: 1>} : vector<128x256xi32>
    %17 = arith.sitofp %16 : vector<128x256xi32> to vector<128x256xf32>
    %cst_8 = arith.constant dense<0x7F800000> : vector<128xf32>
    %18 = vector.multi_reduction <minimumf>, %15, %cst_8 [1] : vector<128x256xf32> to vector<128xf32>
    %19 = vector.shape_cast %18 : vector<128xf32> to vector<128x1xf32>
    %20 = vector.broadcast %19 : vector<128x1xf32> to vector<128x256xf32>
    %21 = arith.cmpf oeq, %15, %20 : vector<128x256xf32>
    %cst_9 = arith.constant 2.560000e+02 : f32
    %22 = vector.broadcast %cst_9 : f32 to vector<128x256xf32>
    %23 = arith.select %21, %17, %22 : vector<128x256xi1>, vector<128x256xf32>
    %cst_10 = arith.constant dense<0x7F800000> : vector<128xf32>
    %24 = vector.multi_reduction <minimumf>, %23, %cst_10 [1] : vector<128x256xf32> to vector<128xf32>
    %25 = vector.shape_cast %24 : vector<128xf32> to vector<128x1xf32>
    %26 = vector.broadcast %25 : vector<128x1xf32> to vector<128x256xf32>
    %27 = arith.cmpf oeq, %17, %26 : vector<128x256xf32>
    %28 = arith.extui %27 : vector<128x256xi1> to vector<128x256xi32>
    %29 = arith.sitofp %28 : vector<128x256xi32> to vector<128x256xf32>
    %cst_11 = arith.constant dense<0.000000e+00> : vector<128x128xf32>
    %30 = tpu.matmul %29, %4, %cst_11 {dimension_numbers = #tpu.dot_dimension_numbers<[1], [0], [0], [1], [0, 0, 1, 1], [], []>} : vector<128x256xf32>, vector<256x128xf32>, vector<128x128xf32> -> vector<128x128xf32>
    %c0_12 = arith.constant 0 : index
    %c0_13 = arith.constant 0 : index
    %31 = vector.load %arg5[%c0_12, %c0_13] : memref<128x256xf32, #tpu.memory_space<vmem>>, vector<128x256xf32>
    tpu.vector_store %arg5[%c0_12, %c0_13], %29 {strides = array<i32>} : memref<128x256xf32, #tpu.memory_space<vmem>>, vector<128x256xf32>,
    %32 = arith.subf %30, %3 : vector<128x128xf32>
    %33 = arith.addf %3, %32 : vector<128x128xf32>
    %c0_14 = arith.constant 0 : index
    %c0_15 = arith.constant 0 : index
    %34 = vector.load %arg4[%c0_14, %c0_15] : memref<128x128xf32, #tpu.memory_space<vmem>>, vector<128x128xf32>
    tpu.vector_store %arg4[%c0_14, %c0_15], %33 {strides = array<i32>} : memref<128x128xf32, #tpu.memory_space<vmem>>, vector<128x128xf32>,
    %c0_16 = arith.constant 0 : index
    %c0_17 = arith.constant 0 : index
    %35 = vector.load %arg8[%c0_16, %c0_17] : memref<1x1xf32, #tpu.memory_space<vmem>>, vector<1x1xf32>
    %36 = arith.mulf %32, %32 : vector<128x128xf32>
    %37 = vector.shape_cast %36 : vector<128x128xf32> to vector<1x128x128xf32>
    %cst_18 = arith.constant dense<0.000000e+00> : vector<1xf32>
    %38 = vector.multi_reduction <add>, %37, %cst_18 [1, 2] : vector<1x128x128xf32> to vector<1xf32>
    %39 = vector.shape_cast %38 : vector<1xf32> to vector<1x1x1xf32>
    %40 = vector.extract %39[0, 0, 0] : f32 from vector<1x1x1xf32>
    %41 = vector.broadcast %40 : f32 to vector<1x1xf32>
    %42 = arith.addf %35, %41 : vector<1x1xf32>
    %c0_19 = arith.constant 0 : index
    %c0_20 = arith.constant 0 : index
    %43 = vector.load %arg8[%c0_19, %c0_20] : memref<1x1xf32, #tpu.memory_space<vmem>>, vector<1x1xf32>
    tpu.vector_store %arg8[%c0_19, %c0_20], %42 {strides = array<i32>} : memref<1x1xf32, #tpu.memory_space<vmem>>, vector<1x1xf32>,
    %c0_21 = arith.constant 0 : index
    %c0_22 = arith.constant 0 : index
    %44 = vector.load %arg9[%c0_21, %c0_22] : memref<1x256xf32, #tpu.memory_space<vmem>>, vector<1x256xf32>
    %cst_23 = arith.constant dense<0.000000e+00> : vector<256xf32>
    %45 = vector.multi_reduction <add>, %29, %cst_23 [0] : vector<128x256xf32> to vector<256xf32>
    %46 = vector.shape_cast %45 : vector<256xf32> to vector<1x256xf32>
    %47 = arith.addf %44, %46 : vector<1x256xf32>
    %c0_24 = arith.constant 0 : index
    %c0_25 = arith.constant 0 : index
    %48 = vector.load %arg9[%c0_24, %c0_25] : memref<1x256xf32, #tpu.memory_space<vmem>>, vector<1x256xf32>
    tpu.vector_store %arg9[%c0_24, %c0_25], %47 {strides = array<i32>} : memref<1x256xf32, #tpu.memory_space<vmem>>, vector<1x256xf32>,
    %c0_i32_26 = arith.constant 0 : i32
    %49 = arith.cmpi eq, %arg0, %c0_i32_26 : i32
    %50 = arith.extui %49 : i1 to i32
    %c0_i32_27 = arith.constant 0 : i32
    %51 = arith.cmpi ne, %50, %c0_i32_27 : i32
    scf.if %51 {
      %c0_28 = arith.constant 0 : index
      %c0_29 = arith.constant 0 : index
      %52 = vector.load %arg8[%c0_28, %c0_29] : memref<1x1xf32, #tpu.memory_space<vmem>>, vector<1x1xf32>
      %cst_30 = arith.constant 1.638400e+04 : f32
      %53 = vector.broadcast %cst_30 : f32 to vector<1x1xf32>
      %54 = arith.divf %52, %53 : vector<1x1xf32>
      %cst_31 = arith.constant 1.250000e+00 : f32
      %55 = vector.broadcast %cst_31 : f32 to vector<1x1xf32>
      %56 = arith.mulf %55, %54 : vector<1x1xf32>
      %c0_32 = arith.constant 0 : index
      %c0_33 = arith.constant 0 : index
      %57 = vector.load %arg6[%c0_32, %c0_33] : memref<1x1xf32, #tpu.memory_space<vmem>>, vector<1x1xf32>
      tpu.vector_store %arg6[%c0_32, %c0_33], %56 {strides = array<i32>} : memref<1x1xf32, #tpu.memory_space<vmem>>, vector<1x1xf32>,
      %c0_34 = arith.constant 0 : index
      %c0_35 = arith.constant 0 : index
      %58 = vector.load %arg9[%c0_34, %c0_35] : memref<1x256xf32, #tpu.memory_space<vmem>>, vector<1x256xf32>
      %cst_36 = arith.constant 1.280000e+02 : f32
      %59 = vector.broadcast %cst_36 : f32 to vector<1x256xf32>
      %60 = arith.divf %58, %59 : vector<1x256xf32>
      %cst_37 = arith.constant 1.000000e-10 : f32
      %61 = vector.broadcast %cst_37 : f32 to vector<1x256xf32>
      %62 = arith.addf %60, %61 : vector<1x256xf32>
      %63 = math.log %62 : vector<1x256xf32>
      %64 = arith.mulf %60, %63 : vector<1x256xf32>
      %cst_38 = arith.constant dense<0.000000e+00> : vector<1xf32>
      %65 = vector.multi_reduction <add>, %64, %cst_38 [1] : vector<1x256xf32> to vector<1xf32>
      %66 = vector.shape_cast %65 : vector<1xf32> to vector<1x1xf32>
      %cst_39 = arith.constant 0.000000e+00 : f32
      %67 = vector.broadcast %cst_39 : f32 to vector<1x1xf32>
      %68 = arith.subf %67, %66 : vector<1x1xf32>
      %69 = math.exp %68 : vector<1x1xf32>
      %c0_40 = arith.constant 0 : index
      %c0_41 = arith.constant 0 : index
      %70 = vector.load %arg7[%c0_40, %c0_41] : memref<1x1xf32, #tpu.memory_space<vmem>>, vector<1x1xf32>
      tpu.vector_store %arg7[%c0_40, %c0_41], %69 {strides = array<i32>} : memref<1x1xf32, #tpu.memory_space<vmem>>, vector<1x1xf32>,
    } else {
    }
    return
  }
  func.func @transform_0(%arg0: i32) -> (i32, i32) {
    %c0_i32 = arith.constant 0 : i32
    %c0_i32_0 = arith.constant 0 : i32
    return %arg0, %c0_i32 : i32, i32
  }
  func.func @transform_1(%arg0: i32) -> (i32, i32) {
    %c0_i32 = arith.constant 0 : i32
    %c0_i32_0 = arith.constant 0 : i32
    %c0_i32_1 = arith.constant 0 : i32
    return %c0_i32, %c0_i32_0 : i32, i32
  }
  func.func @transform_2(%arg0: i32) -> (i32, i32) {
    %c0_i32 = arith.constant 0 : i32
    %c0_i32_0 = arith.constant 0 : i32
    %c0_i32_1 = arith.constant 0 : i32
    return %c0_i32, %c0_i32_0 : i32, i32
  }
  func.func @transform_3(%arg0: i32) -> (i32, i32) {
    %c0_i32 = arith.constant 0 : i32
    %c0_i32_0 = arith.constant 0 : i32
    return %arg0, %c0_i32 : i32, i32
  }
  func.func @transform_4(%arg0: i32) -> (i32, i32) {
    %c0_i32 = arith.constant 0 : i32
    %c0_i32_0 = arith.constant 0 : i32
    return %arg0, %c0_i32 : i32, i32
  }
  func.func @transform_5(%arg0: i32) -> (i32, i32) {
    %c0_i32 = arith.constant 0 : i32
    %c0_i32_0 = arith.constant 0 : i32
    %c0_i32_1 = arith.constant 0 : i32
    return %c0_i32, %c0_i32_0 : i32, i32
  }
  func.func @transform_6(%arg0: i32) -> (i32, i32) {
    %c0_i32 = arith.constant 0 : i32
    %c0_i32_0 = arith.constant 0 : i32
    %c0_i32_1 = arith.constant 0 : i32
    return %c0_i32, %c0_i32_0 : i32, i32
  }
}

</mosaic_0001>

<llo_original>
// kernel: tpu_custom_call.1
$region0: #{tpu_custom_call.1}
  #allocation0 [shape = 'u32[]', space=smem, size = 0x4, offset = 0x4, fixed_abs, tag = 'smem constant byte address 0x4 - core index']
  #allocation1 [shape = 'u32[144,128]{1,0:T(1,128)}', space=vmem, size = 0x12000, scoped, tag = 'internal scratch']
  #allocation2 [shape = 'f32[1,1]{1,0:T(1,128)}', space=vmem, size = 0x200, scoped, tag = 'scratch operand']
  #allocation3 [shape = 'f32[1,256]{1,0:T(1,128)}', space=vmem, size = 0x400, scoped, tag = 'scratch operand']
  %s0 = inlined_call_operand.hbm [shape: f32[128,128], index: 0, kind: input, shape index: {}]
  %s1 = inlined_call_operand.hbm [shape: f32[256,128], index: 1, kind: input, shape index: {}]
  %s2 = inlined_call_operand.vmem [shape: f32[1,256], index: 2, kind: input, shape index: {}]
  %s3 = inlined_call_operand.hbm [shape: f32[128,128], index: 3, kind: output, shape index: {0}]
  %s4 = inlined_call_operand.hbm [shape: f32[128,256], index: 4, kind: output, shape index: {1}]
  %s5 = inlined_call_operand.hbm [shape: f32[1,1], index: 5, kind: output, shape index: {2}]
  %s6 = inlined_call_operand.hbm [shape: f32[1,1], index: 6, kind: output, shape index: {3}]
  %7 = xla_tuple %s3, %s4, %s5, %s6
  %s8 = sld [smem:[#allocation0]]
  $region62: #{tpu_custom_call.1} parent=0
    _
  %s10 = ssub.s32 1, %s8
  %s11 = scalar_select 0, %s10, %s8
  $region1: #{tpu_custom_call.1} parent=0
    #allocation4 [shape = 'u8[65536]{0}', space=vmem, size = 0x10000, scoped, tag = 'input window, operand 0, single buffered']
    #allocation5 [shape = 's32[1]{0}', space=sflag, size = 0x4, scoped, tag = 'scoped memory for tpu_custom_call.1']
    #allocation6 [shape = 's32[1]{0}', space=sflag, size = 0x4, scoped, tag = 'scoped memory for tpu_custom_call.1']
    #allocation7 [shape = 'u8[131072]{0}', space=vmem, size = 0x20000, scoped, tag = 'input window, operand 1, single buffered']
    #allocation8 [shape = 's32[1]{0}', space=sflag, size = 0x4, scoped, tag = 'scoped memory for tpu_custom_call.1']
    #allocation9 [shape = 'u8[65536]{0}', space=vmem, size = 0x10000, scoped, tag = 'output window, operand 0, single buffered']
    #allocation10 [shape = 'u8[131072]{0}', space=vmem, size = 0x20000, scoped, tag = 'output window, operand 1, single buffered']
    #allocation11 [shape = 's32[1]{0}', space=sflag, size = 0x4, scoped, tag = 'scoped memory for tpu_custom_call.1']
    #allocation12 [shape = 'u8[512]{0}', space=vmem, size = 0x400, scoped, tag = 'output window, operand 2, single buffered']
    #allocation13 [shape = 'u8[512]{0}', space=vmem, size = 0x400, scoped, tag = 'output window, operand 3, single buffered']
    #allocation14 [shape = 's32[1]{0}', space=sflag, size = 0x4, scoped, tag = 'scoped memory for tpu_custom_call.1']
    %12 = vsyncpa [#allocation5], 0
    %13 = vsyncpa [#allocation8], 0
    %14 = vsyncpa [#allocation6], 0
    %15 = vsyncpa [#allocation11], 0
    %16 = vsyncpa [#allocation14], 0
    // Predicated region
    $region2: #{tpu_custom_call.1} parent=1 // pred_check
      _
    $region3: #{tpu_custom_call.1} parent=1 // pred_check_branch
      %18 = sbr.rel (0) target = $region5
    $region4: #{tpu_custom_call.1} parent=1 // pred_region
      %s20 = ssub.s32 2048, 2048
      %21 = vsyncadd [#allocation5], %s20
      %s22 = sshll.u32 [#allocation4], 4
      %s23 = int_to_ptr.vmem [resolvable:$true] %s22
      %28 = dma.hbm_to_vmem [thread:$0]  %s0, 2048, %s23, [#allocation5], 128, 128, 8
    $region5: #{tpu_custom_call.1} parent=1 // pred_fallthru
      _
    // Predicated region
    $region6: #{tpu_custom_call.1} parent=1 // pred_check
      _
    $region7: #{tpu_custom_call.1} parent=1 // pred_check_branch
      %30 = sbr.rel (0) target = $region9
    $region8: #{tpu_custom_call.1} parent=1 // pred_region
      %s32 = ssub.s32 4096, 4096
      %33 = vsyncadd [#allocation8], %s32
      %s34 = sshll.u32 [#allocation7], 4
      %s35 = int_to_ptr.vmem [resolvable:$true] %s34
      %40 = dma.hbm_to_vmem [thread:$0]  %s1, 4096, %s35, [#allocation8], 128, 128, 8
    $region9: #{tpu_custom_call.1} parent=1 // pred_fallthru
      _
    // Predicated region
    $region10: #{tpu_custom_call.1} parent=1 // pred_check
      _
    $region11: #{tpu_custom_call.1} parent=1 // pred_check_branch
      %42 = sbr.rel (0) target = $region13
    $region12: #{tpu_custom_call.1} parent=1 // pred_region
      _
    $region13: #{tpu_custom_call.1} parent=1 // pred_fallthru
      _
    // Predicated region
    $region14: #{tpu_custom_call.1} parent=1 // pred_check
      _
    $region15: #{tpu_custom_call.1} parent=1 // pred_check_branch
      %44 = sbr.rel (0) target = $region17
    $region16: #{tpu_custom_call.1} parent=1 // pred_region
      %45 = dma.done [#allocation5], 2048
    $region17: #{tpu_custom_call.1} parent=1 // pred_fallthru
      _
    // Predicated region
    $region18: #{tpu_custom_call.1} parent=1 // pred_check
      _
    $region19: #{tpu_custom_call.1} parent=1 // pred_check_branch
      %47 = sbr.rel (0) target = $region21
    $region20: #{tpu_custom_call.1} parent=1 // pred_region
      %48 = dma.done [#allocation8], 4096
    $region21: #{tpu_custom_call.1} parent=1 // pred_fallthru
      _
    %p49 = scmp.eq.s32.totalorder 0, 0
    // Predicated region
    $region22: #{tpu_custom_call.1} parent=1 // pred_check
      %p50 = pneg %p49
    $region23: #{tpu_custom_call.1} parent=1 // pred_check_branch
      %52 = sbr.rel (%p50) target = $region25
    $region24: #{tpu_custom_call.1} parent=1 // pred_region
      %vm53 = vcmask 0
      %54 = vst.msk [vmem:[#allocation2] sm:$0x1] %vm53, 0.0
      %v55 = vlaneseq
      %vm56 = vcmp.ge.s32.totalorder %v55, 0
      %vm57 = vcmp.lt.s32.totalorder %v55, 256
      %vm58 = vmand %vm56, %vm57
      %59 = vst.msk [vmem:[#allocation3] sm:$0x3] %vm58, 0.0
    $region25: #{tpu_custom_call.1} parent=1 // pred_fallthru
      _
    %v60 = vld [vmem:[#allocation4] sm:$0xff]
    %v61 = vld [vmem:[#allocation4 + $0x8] sm:$0xff]
    %v62 = vld [vmem:[#allocation4 + $0x10] sm:$0xff]
    %v63 = vld [vmem:[#allocation4 + $0x18] sm:$0xff]
    %v64 = vld [vmem:[#allocation4 + $0x20] sm:$0xff]
    %v65 = vld [vmem:[#allocation4 + $0x28] sm:$0xff]
    %v66 = vld [vmem:[#allocation4 + $0x30] sm:$0xff]
    %v67 = vld [vmem:[#allocation4 + $0x38] sm:$0xff]
    %v68 = vld [vmem:[#allocation4 + $0x40] sm:$0xff]
    %v69 = vld [vmem:[#allocation4 + $0x48] sm:$0xff]
    %v70 = vld [vmem:[#allocation4 + $0x50] sm:$0xff]
    %v71 = vld [vmem:[#allocation4 + $0x58] sm:$0xff]
    %v72 = vld [vmem:[#allocation4 + $0x60] sm:$0xff]
    %v73 = vld [vmem:[#allocation4 + $0x68] sm:$0xff]
    %v74 = vld [vmem:[#allocation4 + $0x70] sm:$0xff]
    %v75 = vld [vmem:[#allocation4 + $0x78] sm:$0xff]
    %v76 = vld [vmem:[#allocation7] sm:$0xff]
    %v77 = vld [vmem:[#allocation7 + $0x8] sm:$0xff]
    %v78 = vld [vmem:[#allocation7 + $0x10] sm:$0xff]
    %v79 = vld [vmem:[#allocation7 + $0x18] sm:$0xff]
    %v80 = vld [vmem:[#allocation7 + $0x20] sm:$0xff]
    %v81 = vld [vmem:[#allocation7 + $0x28] sm:$0xff]
    %v82 = vld [vmem:[#allocation7 + $0x30] sm:$0xff]
    %v83 = vld [vmem:[#allocation7 + $0x38] sm:$0xff]
    %v84 = vld [vmem:[#allocation7 + $0x40] sm:$0xff]
    %v85 = vld [vmem:[#allocation7 + $0x48] sm:$0xff]
    %v86 = vld [vmem:[#allocation7 + $0x50] sm:$0xff]
    %v87 = vld [vmem:[#allocation7 + $0x58] sm:$0xff]
    %v88 = vld [vmem:[#allocation7 + $0x60] sm:$0xff]
    %v89 = vld [vmem:[#allocation7 + $0x68] sm:$0xff]
    %v90 = vld [vmem:[#allocation7 + $0x70] sm:$0xff]
    %v91 = vld [vmem:[#allocation7 + $0x78] sm:$0xff]
    %v92 = vld [vmem:[#allocation7 + $0x80] sm:$0xff]
    %v93 = vld [vmem:[#allocation7 + $0x88] sm:$0xff]
    %v94 = vld [vmem:[#allocation7 + $0x90] sm:$0xff]
    %v95 = vld [vmem:[#allocation7 + $0x98] sm:$0xff]
    %v96 = vld [vmem:[#allocation7 + $0xa0] sm:$0xff]
    %v97 = vld [vmem:[#allocation7 + $0xa8] sm:$0xff]
    %v98 = vld [vmem:[#allocation7 + $0xb0] sm:$0xff]
    %v99 = vld [vmem:[#allocation7 + $0xb8] sm:$0xff]
    %v100 = vld [vmem:[#allocation7 + $0xc0] sm:$0xff]
    %v101 = vld [vmem:[#allocation7 + $0xc8] sm:$0xff]
    %v102 = vld [vmem:[#allocation7 + $0xd0] sm:$0xff]
    %v103 = vld [vmem:[#allocation7 + $0xd8] sm:$0xff]
    %v104 = vld [vmem:[#allocation7 + $0xe0] sm:$0xff]
    %v105 = vld [vmem:[#allocation7 + $0xe8] sm:$0xff]
    %v106 = vld [vmem:[#allocation7 + $0xf0] sm:$0xff]
    %v107 = vld [vmem:[#allocation7 + $0xf8] sm:$0xff]
    %v108 = vmul.f32 %v60, %v60
    %v109 = vmul.f32 %v61, %v61
    %v110 = vmul.f32 %v62, %v62
    %v111 = vmul.f32 %v63, %v63
    %v112 = vmul.f32 %v64, %v64
    %v113 = vmul.f32 %v65, %v65
    %v114 = vmul.f32 %v66, %v66
    %v115 = vmul.f32 %v67, %v67
    %v116 = vmul.f32 %v68, %v68
    %v117 = vmul.f32 %v69, %v69
    %v118 = vmul.f32 %v70, %v70
    %v119 = vmul.f32 %v71, %v71
    %v120 = vmul.f32 %v72, %v72
    %v121 = vmul.f32 %v73, %v73
    %v122 = vmul.f32 %v74, %v74
    %v123 = vmul.f32 %v75, %v75
    %124 = vadd.xlane.f32.xlu0 %v108
    %v125 = vpop.xlane.xlu0 %124
    %126 = vadd.xlane.f32.xlu0 %v109
    %v127 = vpop.xlane.xlu0 %126
    %128 = vadd.xlane.f32.xlu0 %v110
    %v129 = vpop.xlane.xlu0 %128
    %130 = vadd.xlane.f32.xlu0 %v111
    %v131 = vpop.xlane.xlu0 %130
    %132 = vadd.xlane.f32.xlu0 %v112
    %v133 = vpop.xlane.xlu0 %132
    %134 = vadd.xlane.f32.xlu0 %v113
    %v135 = vpop.xlane.xlu0 %134
    %136 = vadd.xlane.f32.xlu0 %v114
    %v137 = vpop.xlane.xlu0 %136
    %138 = vadd.xlane.f32.xlu0 %v115
    %v139 = vpop.xlane.xlu0 %138
    %140 = vadd.xlane.f32.xlu0 %v116
    %v141 = vpop.xlane.xlu0 %140
    %142 = vadd.xlane.f32.xlu0 %v117
    %v143 = vpop.xlane.xlu0 %142
    %144 = vadd.xlane.f32.xlu0 %v118
    %v145 = vpop.xlane.xlu0 %144
    %146 = vadd.xlane.f32.xlu0 %v119
    %v147 = vpop.xlane.xlu0 %146
    %148 = vadd.xlane.f32.xlu0 %v120
    %v149 = vpop.xlane.xlu0 %148
    %150 = vadd.xlane.f32.xlu0 %v121
    %v151 = vpop.xlane.xlu0 %150
    %152 = vadd.xlane.f32.xlu0 %v122
    %v153 = vpop.xlane.xlu0 %152
    %154 = vadd.xlane.f32.xlu0 %v123
    %v155 = vpop.xlane.xlu0 %154
    %156 = vmatprep.subr.mxu0 0.0
    %157 = vmatpush1.xpose.msra.mxu0 %v91
    %158 = vmatprep.subr.mxu0 0.0
    %159 = vmatpush1.xpose.msra.mxu0 %v90
    %160 = vmatprep.subr.mxu0 0.0
    %161 = vmatpush1.xpose.msra.mxu0 %v89
    %162 = vmatprep.subr.mxu0 0.0
    %163 = vmatpush1.xpose.msra.mxu0 %v88
    %164 = vmatprep.subr.mxu0 0.0
    %165 = vmatpush1.xpose.msra.mxu0 %v87
    %166 = vmatprep.subr.mxu0 0.0
    %167 = vmatpush1.xpose.msra.mxu0 %v86
    %168 = vmatprep.subr.mxu0 0.0
    %169 = vmatpush1.xpose.msra.mxu0 %v85
    %170 = vmatprep.subr.mxu0 0.0
    %171 = vmatpush1.xpose.msra.mxu0 %v84
    %172 = vmatprep.subr.mxu0 0.0
    %173 = vmatpush1.xpose.msra.mxu0 %v83
    %174 = vmatprep.subr.mxu0 0.0
    %175 = vmatpush1.xpose.msra.mxu0 %v82
    %176 = vmatprep.subr.mxu0 0.0
    %177 = vmatpush1.xpose.msra.mxu0 %v81
    %178 = vmatprep.subr.mxu0 0.0
    %179 = vmatpush1.xpose.msra.mxu0 %v80
    %180 = vmatprep.subr.mxu0 0.0
    %181 = vmatpush1.xpose.msra.mxu0 %v79
    %182 = vmatprep.subr.mxu0 0.0
    %183 = vmatpush1.xpose.msra.mxu0 %v78
    %184 = vmatprep.subr.mxu0 0.0
    %185 = vmatpush1.xpose.msra.mxu0 %v77
    %186 = vmatprep.subr.mxu0 0.0
    %187 = vmatpush1.xpose.msra.mxu0 %v76
    %188 = vmatprep.subr.mxu0 0.0
    %189 = vmatpush2.xpose.msra.mxu0 %v107
    %190 = vmatprep.subr.mxu0 0.0
    %191 = vmatpush2.xpose.msra.mxu0 %v106
    %192 = vmatprep.subr.mxu0 0.0
    %193 = vmatpush2.xpose.msra.mxu0 %v105
    %194 = vmatprep.subr.mxu0 0.0
    %195 = vmatpush2.xpose.msra.mxu0 %v104
    %196 = vmatprep.subr.mxu0 0.0
    %197 = vmatpush2.xpose.msra.mxu0 %v103
    %198 = vmatprep.subr.mxu0 0.0
    %199 = vmatpush2.xpose.msra.mxu0 %v102
    %200 = vmatprep.subr.mxu0 0.0
    %201 = vmatpush2.xpose.msra.mxu0 %v101
    %202 = vmatprep.subr.mxu0 0.0
    %203 = vmatpush2.xpose.msra.mxu0 %v100
    %204 = vmatprep.subr.mxu0 0.0
    %205 = vmatpush2.xpose.msra.mxu0 %v99
    %206 = vmatprep.subr.mxu0 0.0
    %207 = vmatpush2.xpose.msra.mxu0 %v98
    %208 = vmatprep.subr.mxu0 0.0
    %209 = vmatpush2.xpose.msra.mxu0 %v97
    %210 = vmatprep.subr.mxu0 0.0
    %211 = vmatpush2.xpose.msra.mxu0 %v96
    %212 = vmatprep.subr.mxu0 0.0
    %213 = vmatpush2.xpose.msra.mxu0 %v95
    %214 = vmatprep.subr.mxu0 0.0
    %215 = vmatpush2.xpose.msra.mxu0 %v94
    %216 = vmatprep.subr.mxu0 0.0
    %217 = vmatpush2.xpose.msra.mxu0 %v93
    %218 = vmatprep.subr.mxu0 0.0
    %219 = vmatpush2.xpose.msra.mxu0 %v92
    %220 = vmatprep.mubr.f32.mxu0 0.0
    %221 = vmatmul.mubr.f32.gmra.mxu0 %v60
    %v222 = vpop.f32.mrf.mxu0
    %v223 = vadd.f32 0.0, %v222
    %v224 = vpop.f32.mrf.mxu0
    %v225 = vadd.f32 0.0, %v224
    %226 = vmatprep.mubr.f32.mxu0 0.0
    %227 = vmatmul.mubr.f32.gmra.mxu0 %v61
    %v228 = vpop.f32.mrf.mxu0
    %v229 = vadd.f32 0.0, %v228
    %v230 = vpop.f32.mrf.mxu0
    %v231 = vadd.f32 0.0, %v230
    %232 = vmatprep.mubr.f32.mxu0 0.0
    %233 = vmatmul.mubr.f32.gmra.mxu0 %v62
    %v234 = vpop.f32.mrf.mxu0
    %v235 = vadd.f32 0.0, %v234
    %v236 = vpop.f32.mrf.mxu0
    %v237 = vadd.f32 0.0, %v236
    %238 = vmatprep.mubr.f32.mxu0 0.0
    %239 = vmatmul.mubr.f32.gmra.mxu0 %v63
    %v240 = vpop.f32.mrf.mxu0
    %v241 = vadd.f32 0.0, %v240
    %v242 = vpop.f32.mrf.mxu0
    %v243 = vadd.f32 0.0, %v242
    %244 = vmatprep.mubr.f32.mxu0 0.0
    %245 = vmatmul.mubr.f32.gmra.mxu0 %v64
    %v246 = vpop.f32.mrf.mxu0
    %v247 = vadd.f32 0.0, %v246
    %v248 = vpop.f32.mrf.mxu0
    %v249 = vadd.f32 0.0, %v248
    %250 = vmatprep.mubr.f32.mxu0 0.0
    %251 = vmatmul.mubr.f32.gmra.mxu0 %v65
    %v252 = vpop.f32.mrf.mxu0
    %v253 = vadd.f32 0.0, %v252
    %v254 = vpop.f32.mrf.mxu0
    %v255 = vadd.f32 0.0, %v254
    %256 = vmatprep.mubr.f32.mxu0 0.0
    %257 = vmatmul.mubr.f32.gmra.mxu0 %v66
    %v258 = vpop.f32.mrf.mxu0
    %v259 = vadd.f32 0.0, %v258
    %v260 = vpop.f32.mrf.mxu0
    %v261 = vadd.f32 0.0, %v260
    %262 = vmatprep.mubr.f32.mxu0 0.0
    %263 = vmatmul.mubr.f32.gmra.mxu0 %v67
    %v264 = vpop.f32.mrf.mxu0
    %v265 = vadd.f32 0.0, %v264
    %v266 = vpop.f32.mrf.mxu0
    %v267 = vadd.f32 0.0, %v266
    %268 = vmatprep.mubr.f32.mxu0 0.0
    %269 = vmatmul.mubr.f32.gmra.mxu0 %v68
    %v270 = vpop.f32.mrf.mxu0
    %v271 = vadd.f32 0.0, %v270
    %v272 = vpop.f32.mrf.mxu0
    %v273 = vadd.f32 0.0, %v272
    %274 = vmatprep.mubr.f32.mxu0 0.0
    %275 = vmatmul.mubr.f32.gmra.mxu0 %v69
    %v276 = vpop.f32.mrf.mxu0
    %v277 = vadd.f32 0.0, %v276
    %v278 = vpop.f32.mrf.mxu0
    %v279 = vadd.f32 0.0, %v278
    %280 = vmatprep.mubr.f32.mxu0 0.0
    %281 = vmatmul.mubr.f32.gmra.mxu0 %v70
    %v282 = vpop.f32.mrf.mxu0
    %v283 = vadd.f32 0.0, %v282
    %v284 = vpop.f32.mrf.mxu0
    %v285 = vadd.f32 0.0, %v284
    %286 = vmatprep.mubr.f32.mxu0 0.0
    %287 = vmatmul.mubr.f32.gmra.mxu0 %v71
    %v288 = vpop.f32.mrf.mxu0
    %v289 = vadd.f32 0.0, %v288
    %v290 = vpop.f32.mrf.mxu0
    %v291 = vadd.f32 0.0, %v290
    %292 = vmatprep.mubr.f32.mxu0 0.0
    %293 = vmatmul.mubr.f32.gmra.mxu0 %v72
    %v294 = vpop.f32.mrf.mxu0
    %v295 = vadd.f32 0.0, %v294
    %v296 = vpop.f32.mrf.mxu0
    %v297 = vadd.f32 0.0, %v296
    %298 = vmatprep.mubr.f32.mxu0 0.0
    %299 = vmatmul.mubr.f32.gmra.mxu0 %v73
    %v300 = vpop.f32.mrf.mxu0
    %v301 = vadd.f32 0.0, %v300
    %v302 = vpop.f32.mrf.mxu0
    %v303 = vadd.f32 0.0, %v302
    %304 = vmatprep.mubr.f32.mxu0 0.0
    %305 = vmatmul.mubr.f32.gmra.mxu0 %v74
    %v306 = vpop.f32.mrf.mxu0
    %v307 = vadd.f32 0.0, %v306
    %v308 = vpop.f32.mrf.mxu0
    %v309 = vadd.f32 0.0, %v308
    %310 = vmatprep.mubr.f32.mxu0 0.0
    %311 = vmatmul.mubr.f32.gmra.mxu0 %v75
    %v312 = vpop.f32.mrf.mxu0
    %v313 = vadd.f32 0.0, %v312
    %v314 = vpop.f32.mrf.mxu0
    %v315 = vadd.f32 0.0, %v314
    %316 = vdwg.mxu0
    %v317 = vld [vmem:[%s2] sm:$0x3]
    %v319 = vlaneseq
    %v320 = vshrl.u32 %v319, 7
    %v321 = vsub.s32 0, %v320
    %v322 = vrot.slane %v317, %v321
    %v323 = vlaneseq
    %v324 = vshrl.u32 %v323, 7
    %v325 = vsub.s32 1, %v324
    %v326 = vrot.slane %v317, %v325
    %v329 = vadd.f32 %v125, %v322
    %v330 = vadd.f32 %v125, %v326
    %v331 = vadd.f32 %v127, %v322
    %v332 = vadd.f32 %v127, %v326
    %v333 = vadd.f32 %v129, %v322
    %v334 = vadd.f32 %v129, %v326
    %v335 = vadd.f32 %v131, %v322
    %v336 = vadd.f32 %v131, %v326
    %v337 = vadd.f32 %v133, %v322
    %v338 = vadd.f32 %v133, %v326
    %v339 = vadd.f32 %v135, %v322
    %v340 = vadd.f32 %v135, %v326
    %v341 = vadd.f32 %v137, %v322
    %v342 = vadd.f32 %v137, %v326
    %v343 = vadd.f32 %v139, %v322
    %v344 = vadd.f32 %v139, %v326
    %v345 = vadd.f32 %v141, %v322
    %v346 = vadd.f32 %v141, %v326
    %v347 = vadd.f32 %v143, %v322
    %v348 = vadd.f32 %v143, %v326
    %v349 = vadd.f32 %v145, %v322
    %v350 = vadd.f32 %v145, %v326
    %v351 = vadd.f32 %v147, %v322
    %v352 = vadd.f32 %v147, %v326
    %v353 = vadd.f32 %v149, %v322
    %v354 = vadd.f32 %v149, %v326
    %v355 = vadd.f32 %v151, %v322
    %v356 = vadd.f32 %v151, %v326
    %v357 = vadd.f32 %v153, %v322
    %v358 = vadd.f32 %v153, %v326
    %v359 = vadd.f32 %v155, %v322
    %v360 = vadd.f32 %v155, %v326
    %v361 = vmul.f32 %v223, 2.0
    %v362 = vmul.f32 %v225, 2.0
    %v363 = vmul.f32 %v229, 2.0
    %v364 = vmul.f32 %v231, 2.0
    %v365 = vmul.f32 %v235, 2.0
    %v366 = vmul.f32 %v237, 2.0
    %v367 = vmul.f32 %v241, 2.0
    %v368 = vmul.f32 %v243, 2.0
    %v369 = vmul.f32 %v247, 2.0
    %v370 = vmul.f32 %v249, 2.0
    %v371 = vmul.f32 %v253, 2.0
    %v372 = vmul.f32 %v255, 2.0
    %v373 = vmul.f32 %v259, 2.0
    %v374 = vmul.f32 %v261, 2.0
    %v375 = vmul.f32 %v265, 2.0
    %v376 = vmul.f32 %v267, 2.0
    %v377 = vmul.f32 %v271, 2.0
    %v378 = vmul.f32 %v273, 2.0
    %v379 = vmul.f32 %v277, 2.0
    %v380 = vmul.f32 %v279, 2.0
    %v381 = vmul.f32 %v283, 2.0
    %v382 = vmul.f32 %v285, 2.0
    %v383 = vmul.f32 %v289, 2.0
    %v384 = vmul.f32 %v291, 2.0
    %v385 = vmul.f32 %v295, 2.0
    %v386 = vmul.f32 %v297, 2.0
    %v387 = vmul.f32 %v301, 2.0
    %v388 = vmul.f32 %v303, 2.0
    %v389 = vmul.f32 %v307, 2.0
    %v390 = vmul.f32 %v309, 2.0
    %v391 = vmul.f32 %v313, 2.0
    %v392 = vmul.f32 %v315, 2.0
    %v393 = vsub.f32 %v329, %v361
    %v394 = vsub.f32 %v330, %v362
    %v395 = vsub.f32 %v331, %v363
    %v396 = vsub.f32 %v332, %v364
    %v397 = vsub.f32 %v333, %v365
    %v398 = vsub.f32 %v334, %v366
    %v399 = vsub.f32 %v335, %v367
    %v400 = vsub.f32 %v336, %v368
    %v401 = vsub.f32 %v337, %v369
    %v402 = vsub.f32 %v338, %v370
    %v403 = vsub.f32 %v339, %v371
    %v404 = vsub.f32 %v340, %v372
    %v405 = vsub.f32 %v341, %v373
    %v406 = vsub.f32 %v342, %v374
    %v407 = vsub.f32 %v343, %v375
    %v408 = vsub.f32 %v344, %v376
    %v409 = vsub.f32 %v345, %v377
    %v410 = vsub.f32 %v346, %v378
    %v411 = vsub.f32 %v347, %v379
    %v412 = vsub.f32 %v348, %v380
    %v413 = vsub.f32 %v349, %v381
    %v414 = vsub.f32 %v350, %v382
    %v415 = vsub.f32 %v351, %v383
    %v416 = vsub.f32 %v352, %v384
    %v417 = vsub.f32 %v353, %v385
    %v418 = vsub.f32 %v354, %v386
    %v419 = vsub.f32 %v355, %v387
    %v420 = vsub.f32 %v356, %v388
    %v421 = vsub.f32 %v357, %v389
    %v422 = vsub.f32 %v358, %v390
    %v423 = vsub.f32 %v359, %v391
    %v424 = vsub.f32 %v360, %v392
    %v425 = vlaneseq
    %v426 = vand.u32 %v425, 127
    %v427 = vadd.s32 %v426, 128
    %v428 = vcvt.s32.f32 %v426
    %v429 = vcvt.s32.f32 %v427
    %v430 = vmin.f32 %v393, %v394
    %431 = vmin.xlane.f32.xlu0 %v430
    %v432 = vpop.xlane.xlu0 %431
    %v433 = vmin.f32 %v395, %v396
    %434 = vmin.xlane.f32.xlu0 %v433
    %v435 = vpop.xlane.xlu0 %434
    %v436 = vmin.f32 %v397, %v398
    %437 = vmin.xlane.f32.xlu0 %v436
    %v438 = vpop.xlane.xlu0 %437
    %v439 = vmin.f32 %v399, %v400
    %440 = vmin.xlane.f32.xlu0 %v439
    %v441 = vpop.xlane.xlu0 %440
    %v442 = vmin.f32 %v401, %v402
    %443 = vmin.xlane.f32.xlu0 %v442
    %v444 = vpop.xlane.xlu0 %443
    %v445 = vmin.f32 %v403, %v404
    %446 = vmin.xlane.f32.xlu0 %v445
    %v447 = vpop.xlane.xlu0 %446
    %v448 = vmin.f32 %v405, %v406
    %449 = vmin.xlane.f32.xlu0 %v448
    %v450 = vpop.xlane.xlu0 %449
    %v451 = vmin.f32 %v407, %v408
    %452 = vmin.xlane.f32.xlu0 %v451
    %v453 = vpop.xlane.xlu0 %452
    %v454 = vmin.f32 %v409, %v410
    %455 = vmin.xlane.f32.xlu0 %v454
    %v456 = vpop.xlane.xlu0 %455
    %v457 = vmin.f32 %v411, %v412
    %458 = vmin.xlane.f32.xlu0 %v457
    %v459 = vpop.xlane.xlu0 %458
    %v460 = vmin.f32 %v413, %v414
    %461 = vmin.xlane.f32.xlu0 %v460
    %v462 = vpop.xlane.xlu0 %461
    %v463 = vmin.f32 %v415, %v416
    %464 = vmin.xlane.f32.xlu0 %v463
    %v465 = vpop.xlane.xlu0 %464
    %v466 = vmin.f32 %v417, %v418
    %467 = vmin.xlane.f32.xlu0 %v466
    %v468 = vpop.xlane.xlu0 %467
    %v469 = vmin.f32 %v419, %v420
    %470 = vmin.xlane.f32.xlu0 %v469
    %v471 = vpop.xlane.xlu0 %470
    %v472 = vmin.f32 %v421, %v422
    %473 = vmin.xlane.f32.xlu0 %v472
    %v474 = vpop.xlane.xlu0 %473
    %v475 = vmin.f32 %v423, %v424
    %476 = vmin.xlane.f32.xlu0 %v475
    %v477 = vpop.xlane.xlu0 %476
    %vm478 = vcmp.eq.f32.partialorder %v393, %v432
    %vm479 = vcmp.eq.f32.partialorder %v394, %v432
    %vm480 = vcmp.eq.f32.partialorder %v395, %v435
    %vm481 = vcmp.eq.f32.partialorder %v396, %v435
    %vm482 = vcmp.eq.f32.partialorder %v397, %v438
    %vm483 = vcmp.eq.f32.partialorder %v398, %v438
    %vm484 = vcmp.eq.f32.partialorder %v399, %v441
    %vm485 = vcmp.eq.f32.partialorder %v400, %v441
    %vm486 = vcmp.eq.f32.partialorder %v401, %v444
    %vm487 = vcmp.eq.f32.partialorder %v402, %v444
    %vm488 = vcmp.eq.f32.partialorder %v403, %v447
    %vm489 = vcmp.eq.f32.partialorder %v404, %v447
    %vm490 = vcmp.eq.f32.partialorder %v405, %v450
    %vm491 = vcmp.eq.f32.partialorder %v406, %v450
    %vm492 = vcmp.eq.f32.partialorder %v407, %v453
    %vm493 = vcmp.eq.f32.partialorder %v408, %v453
    %vm494 = vcmp.eq.f32.partialorder %v409, %v456
    %vm495 = vcmp.eq.f32.partialorder %v410, %v456
    %vm496 = vcmp.eq.f32.partialorder %v411, %v459
    %vm497 = vcmp.eq.f32.partialorder %v412, %v459
    %vm498 = vcmp.eq.f32.partialorder %v413, %v462
    %vm499 = vcmp.eq.f32.partialorder %v414, %v462
    %vm500 = vcmp.eq.f32.partialorder %v415, %v465
    %vm501 = vcmp.eq.f32.partialorder %v416, %v465
    %vm502 = vcmp.eq.f32.partialorder %v417, %v468
    %vm503 = vcmp.eq.f32.partialorder %v418, %v468
    %vm504 = vcmp.eq.f32.partialorder %v419, %v471
    %vm505 = vcmp.eq.f32.partialorder %v420, %v471
    %vm506 = vcmp.eq.f32.partialorder %v421, %v474
    %vm507 = vcmp.eq.f32.partialorder %v422, %v474
    %vm508 = vcmp.eq.f32.partialorder %v423, %v477
    %vm509 = vcmp.eq.f32.partialorder %v424, %v477
    %v510 = vsel %vm478, %v428, 256.0
    %v511 = vsel %vm479, %v429, 256.0
    %v512 = vsel %vm480, %v428, 256.0
    %v513 = vsel %vm481, %v429, 256.0
    %v514 = vsel %vm482, %v428, 256.0
    %v515 = vsel %vm483, %v429, 256.0
    %v516 = vsel %vm484, %v428, 256.0
    %v517 = vsel %vm485, %v429, 256.0
    %v518 = vsel %vm486, %v428, 256.0
    %v519 = vsel %vm487, %v429, 256.0
    %v520 = vsel %vm488, %v428, 256.0
    %v521 = vsel %vm489, %v429, 256.0
    %v522 = vsel %vm490, %v428, 256.0
    %v523 = vsel %vm491, %v429, 256.0
    %v524 = vsel %vm492, %v428, 256.0
    %v525 = vsel %vm493, %v429, 256.0
    %v526 = vsel %vm494, %v428, 256.0
    %v527 = vsel %vm495, %v429, 256.0
    %v528 = vsel %vm496, %v428, 256.0
    %v529 = vsel %vm497, %v429, 256.0
    %v530 = vsel %vm498, %v428, 256.0
    %v531 = vsel %vm499, %v429, 256.0
    %v532 = vsel %vm500, %v428, 256.0
    %v533 = vsel %vm501, %v429, 256.0
    %v534 = vsel %vm502, %v428, 256.0
    %v535 = vsel %vm503, %v429, 256.0
    %v536 = vsel %vm504, %v428, 256.0
    %v537 = vsel %vm505, %v429, 256.0
    %v538 = vsel %vm506, %v428, 256.0
    %v539 = vsel %vm507, %v429, 256.0
    %v540 = vsel %vm508, %v428, 256.0
    %v541 = vsel %vm509, %v429, 256.0
    %v542 = vmin.f32 %v510, %v511
    %543 = vmin.xlane.f32.xlu0 %v542
    %v544 = vpop.xlane.xlu0 %543
    %v545 = vmin.f32 %v512, %v513
    %546 = vmin.xlane.f32.xlu0 %v545
    %v547 = vpop.xlane.xlu0 %546
    %v548 = vmin.f32 %v514, %v515
    %549 = vmin.xlane.f32.xlu0 %v548
    %v550 = vpop.xlane.xlu0 %549
    %v551 = vmin.f32 %v516, %v517
    %552 = vmin.xlane.f32.xlu0 %v551
    %v553 = vpop.xlane.xlu0 %552
    %v554 = vmin.f32 %v518, %v519
    %555 = vmin.xlane.f32.xlu0 %v554
    %v556 = vpop.xlane.xlu0 %555
    %v557 = vmin.f32 %v520, %v521
    %558 = vmin.xlane.f32.xlu0 %v557
    %v559 = vpop.xlane.xlu0 %558
    %v560 = vmin.f32 %v522, %v523
    %561 = vmin.xlane.f32.xlu0 %v560
    %v562 = vpop.xlane.xlu0 %561
    %v563 = vmin.f32 %v524, %v525
    %564 = vmin.xlane.f32.xlu0 %v563
    %v565 = vpop.xlane.xlu0 %564
    %v566 = vmin.f32 %v526, %v527
    %567 = vmin.xlane.f32.xlu0 %v566
    %v568 = vpop.xlane.xlu0 %567
    %v569 = vmin.f32 %v528, %v529
    %570 = vmin.xlane.f32.xlu0 %v569
    %v571 = vpop.xlane.xlu0 %570
    %v572 = vmin.f32 %v530, %v531
    %573 = vmin.xlane.f32.xlu0 %v572
    %v574 = vpop.xlane.xlu0 %573
    %v575 = vmin.f32 %v532, %v533
    %576 = vmin.xlane.f32.xlu0 %v575
    %v577 = vpop.xlane.xlu0 %576
    %v578 = vmin.f32 %v534, %v535
    %579 = vmin.xlane.f32.xlu0 %v578
    %v580 = vpop.xlane.xlu0 %579
    %v581 = vmin.f32 %v536, %v537
    %582 = vmin.xlane.f32.xlu0 %v581
    %v583 = vpop.xlane.xlu0 %582
    %v584 = vmin.f32 %v538, %v539
    %585 = vmin.xlane.f32.xlu0 %v584
    %v586 = vpop.xlane.xlu0 %585
    %v587 = vmin.f32 %v540, %v541
    %588 = vmin.xlane.f32.xlu0 %v587
    %v589 = vpop.xlane.xlu0 %588
    %vm590 = vcmp.eq.f32.partialorder %v428, %v544
    %vm591 = vcmp.eq.f32.partialorder %v429, %v544
    %vm592 = vcmp.eq.f32.partialorder %v428, %v547
    %vm593 = vcmp.eq.f32.partialorder %v429, %v547
    %vm594 = vcmp.eq.f32.partialorder %v428, %v550
    %vm595 = vcmp.eq.f32.partialorder %v429, %v550
    %vm596 = vcmp.eq.f32.partialorder %v428, %v553
    %vm597 = vcmp.eq.f32.partialorder %v429, %v553
    %vm598 = vcmp.eq.f32.partialorder %v428, %v556
    %vm599 = vcmp.eq.f32.partialorder %v429, %v556
    %vm600 = vcmp.eq.f32.partialorder %v428, %v559
    %vm601 = vcmp.eq.f32.partialorder %v429, %v559
    %vm602 = vcmp.eq.f32.partialorder %v428, %v562
    %vm603 = vcmp.eq.f32.partialorder %v429, %v562
    %vm604 = vcmp.eq.f32.partialorder %v428, %v565
    %vm605 = vcmp.eq.f32.partialorder %v429, %v565
    %vm606 = vcmp.eq.f32.partialorder %v428, %v568
    %vm607 = vcmp.eq.f32.partialorder %v429, %v568
    %vm608 = vcmp.eq.f32.partialorder %v428, %v571
    %vm609 = vcmp.eq.f32.partialorder %v429, %v571
    %vm610 = vcmp.eq.f32.partialorder %v428, %v574
    %vm611 = vcmp.eq.f32.partialorder %v429, %v574
    %vm612 = vcmp.eq.f32.partialorder %v428, %v577
    %vm613 = vcmp.eq.f32.partialorder %v429, %v577
    %vm614 = vcmp.eq.f32.partialorder %v428, %v580
    %vm615 = vcmp.eq.f32.partialorder %v429, %v580
    %vm616 = vcmp.eq.f32.partialorder %v428, %v583
    %vm617 = vcmp.eq.f32.partialorder %v429, %v583
    %vm618 = vcmp.eq.f32.partialorder %v428, %v586
    %vm619 = vcmp.eq.f32.partialorder %v429, %v586
    %vm620 = vcmp.eq.f32.partialorder %v428, %v589
    %vm621 = vcmp.eq.f32.partialorder %v429, %v589
    %v622 = vsel %vm590, 1, 0
    %v623 = vsel %vm591, 1, 0
    %v624 = vsel %vm592, 1, 0
    %v625 = vsel %vm593, 1, 0
    %v626 = vsel %vm594, 1, 0
    %v627 = vsel %vm595, 1, 0
    %v628 = vsel %vm596, 1, 0
    %v629 = vsel %vm597, 1, 0
    %v630 = vsel %vm598, 1, 0
    %v631 = vsel %vm599, 1, 0
    %v632 = vsel %vm600, 1, 0
    %v633 = vsel %vm601, 1, 0
    %v634 = vsel %vm602, 1, 0
    %v635 = vsel %vm603, 1, 0
    %v636 = vsel %vm604, 1, 0
    %v637 = vsel %vm605, 1, 0
    %v638 = vsel %vm606, 1, 0
    %v639 = vsel %vm607, 1, 0
    %v640 = vsel %vm608, 1, 0
    %v641 = vsel %vm609, 1, 0
    %v642 = vsel %vm610, 1, 0
    %v643 = vsel %vm611, 1, 0
    %v644 = vsel %vm612, 1, 0
    %v645 = vsel %vm613, 1, 0
    %v646 = vsel %vm614, 1, 0
    %v647 = vsel %vm615, 1, 0
    %v648 = vsel %vm616, 1, 0
    %v649 = vsel %vm617, 1, 0
    %v650 = vsel %vm618, 1, 0
    %v651 = vsel %vm619, 1, 0
    %v652 = vsel %vm620, 1, 0
    %v653 = vsel %vm621, 1, 0
    %v654 = vcvt.s32.f32 %v622
    %v655 = vcvt.s32.f32 %v623
    %v656 = vcvt.s32.f32 %v624
    %v657 = vcvt.s32.f32 %v625
    %v658 = vcvt.s32.f32 %v626
    %v659 = vcvt.s32.f32 %v627
    %v660 = vcvt.s32.f32 %v628
    %v661 = vcvt.s32.f32 %v629
    %v662 = vcvt.s32.f32 %v630
    %v663 = vcvt.s32.f32 %v631
    %v664 = vcvt.s32.f32 %v632
    %v665 = vcvt.s32.f32 %v633
    %v666 = vcvt.s32.f32 %v634
    %v667 = vcvt.s32.f32 %v635
    %v668 = vcvt.s32.f32 %v636
    %v669 = vcvt.s32.f32 %v637
    %v670 = vcvt.s32.f32 %v638
    %v671 = vcvt.s32.f32 %v639
    %v672 = vcvt.s32.f32 %v640
    %v673 = vcvt.s32.f32 %v641
    %v674 = vcvt.s32.f32 %v642
    %v675 = vcvt.s32.f32 %v643
    %v676 = vcvt.s32.f32 %v644
    %v677 = vcvt.s32.f32 %v645
    %v678 = vcvt.s32.f32 %v646
    %v679 = vcvt.s32.f32 %v647
    %v680 = vcvt.s32.f32 %v648
    %v681 = vcvt.s32.f32 %v649
    %v682 = vcvt.s32.f32 %v650
    %v683 = vcvt.s32.f32 %v651
    %v684 = vcvt.s32.f32 %v652
    %v685 = vcvt.s32.f32 %v653
    %686 = vmatprep.subr.mxu0 0.0
    %687 = vmatpush1.msra.mxu0 %v91
    %688 = vmatprep.subr.mxu0 0.0
    %689 = vmatpush1.msra.mxu0 %v90
    %690 = vmatprep.subr.mxu0 0.0
    %691 = vmatpush1.msra.mxu0 %v89
    %692 = vmatprep.subr.mxu0 0.0
    %693 = vmatpush1.msra.mxu0 %v88
    %694 = vmatprep.subr.mxu0 0.0
    %695 = vmatpush1.msra.mxu0 %v87
    %696 = vmatprep.subr.mxu0 0.0
    %697 = vmatpush1.msra.mxu0 %v86
    %698 = vmatprep.subr.mxu0 0.0
    %699 = vmatpush1.msra.mxu0 %v85
    %700 = vmatprep.subr.mxu0 0.0
    %701 = vmatpush1.msra.mxu0 %v84
    %702 = vmatprep.subr.mxu0 0.0
    %703 = vmatpush1.msra.mxu0 %v83
    %704 = vmatprep.subr.mxu0 0.0
    %705 = vmatpush1.msra.mxu0 %v82
    %706 = vmatprep.subr.mxu0 0.0
    %707 = vmatpush1.msra.mxu0 %v81
    %708 = vmatprep.subr.mxu0 0.0
    %709 = vmatpush1.msra.mxu0 %v80
    %710 = vmatprep.subr.mxu0 0.0
    %711 = vmatpush1.msra.mxu0 %v79
    %712 = vmatprep.subr.mxu0 0.0
    %713 = vmatpush1.msra.mxu0 %v78
    %714 = vmatprep.subr.mxu0 0.0
    %715 = vmatpush1.msra.mxu0 %v77
    %716 = vmatprep.subr.mxu0 0.0
    %717 = vmatpush1.msra.mxu0 %v76
    %718 = vmatprep.subr.mxu0 0.0
    %719 = vmatpush2.msra.mxu0 %v107
    %720 = vmatprep.subr.mxu0 0.0
    %721 = vmatpush2.msra.mxu0 %v106
    %722 = vmatprep.subr.mxu0 0.0
    %723 = vmatpush2.msra.mxu0 %v105
    %724 = vmatprep.subr.mxu0 0.0
    %725 = vmatpush2.msra.mxu0 %v104
    %726 = vmatprep.subr.mxu0 0.0
    %727 = vmatpush2.msra.mxu0 %v103
    %728 = vmatprep.subr.mxu0 0.0
    %729 = vmatpush2.msra.mxu0 %v102
    %730 = vmatprep.subr.mxu0 0.0
    %731 = vmatpush2.msra.mxu0 %v101
    %732 = vmatprep.subr.mxu0 0.0
    %733 = vmatpush2.msra.mxu0 %v100
    %734 = vmatprep.subr.mxu0 0.0
    %735 = vmatpush2.msra.mxu0 %v99
    %736 = vmatprep.subr.mxu0 0.0
    %737 = vmatpush2.msra.mxu0 %v98
    %738 = vmatprep.subr.mxu0 0.0
    %739 = vmatpush2.msra.mxu0 %v97
    %740 = vmatprep.subr.mxu0 0.0
    %741 = vmatpush2.msra.mxu0 %v96
    %742 = vmatprep.subr.mxu0 0.0
    %743 = vmatpush2.msra.mxu0 %v95
    %744 = vmatprep.subr.mxu0 0.0
    %745 = vmatpush2.msra.mxu0 %v94
    %746 = vmatprep.subr.mxu0 0.0
    %747 = vmatpush2.msra.mxu0 %v93
    %748 = vmatprep.subr.mxu0 0.0
    %749 = vmatpush2.msra.mxu0 %v92
    %750 = vmatprep.mubr.f32.mxu0 %v655
    %751 = vmatmul.mubr.f32.gmra.mxu0 %v654
    %v752 = vpop.f32.mrf.mxu0
    %v753 = vadd.f32 0.0, %v752
    %v754 = vpop.f32.mrf.mxu0
    %755 = vmatprep.mubr.f32.mxu0 %v657
    %756 = vmatmul.mubr.f32.gmra.mxu0 %v656
    %v757 = vpop.f32.mrf.mxu0
    %v758 = vadd.f32 0.0, %v757
    %v759 = vpop.f32.mrf.mxu0
    %760 = vmatprep.mubr.f32.mxu0 %v659
    %761 = vmatmul.mubr.f32.gmra.mxu0 %v658
    %v762 = vpop.f32.mrf.mxu0
    %v763 = vadd.f32 0.0, %v762
    %v764 = vpop.f32.mrf.mxu0
    %765 = vmatprep.mubr.f32.mxu0 %v661
    %766 = vmatmul.mubr.f32.gmra.mxu0 %v660
    %v767 = vpop.f32.mrf.mxu0
    %v768 = vadd.f32 0.0, %v767
    %v769 = vpop.f32.mrf.mxu0
    %770 = vmatprep.mubr.f32.mxu0 %v663
    %771 = vmatmul.mubr.f32.gmra.mxu0 %v662
    %v772 = vpop.f32.mrf.mxu0
    %v773 = vadd.f32 0.0, %v772
    %v774 = vpop.f32.mrf.mxu0
    %775 = vmatprep.mubr.f32.mxu0 %v665
    %776 = vmatmul.mubr.f32.gmra.mxu0 %v664
    %v777 = vpop.f32.mrf.mxu0
    %v778 = vadd.f32 0.0, %v777
    %v779 = vpop.f32.mrf.mxu0
    %780 = vmatprep.mubr.f32.mxu0 %v667
    %781 = vmatmul.mubr.f32.gmra.mxu0 %v666
    %v782 = vpop.f32.mrf.mxu0
    %v783 = vadd.f32 0.0, %v782
    %v784 = vpop.f32.mrf.mxu0
    %785 = vmatprep.mubr.f32.mxu0 %v669
    %786 = vmatmul.mubr.f32.gmra.mxu0 %v668
    %v787 = vpop.f32.mrf.mxu0
    %v788 = vadd.f32 0.0, %v787
    %v789 = vpop.f32.mrf.mxu0
    %790 = vmatprep.mubr.f32.mxu0 %v671
    %791 = vmatmul.mubr.f32.gmra.mxu0 %v670
    %v792 = vpop.f32.mrf.mxu0
    %v793 = vadd.f32 0.0, %v792
    %v794 = vpop.f32.mrf.mxu0
    %795 = vmatprep.mubr.f32.mxu0 %v673
    %796 = vmatmul.mubr.f32.gmra.mxu0 %v672
    %v797 = vpop.f32.mrf.mxu0
    %v798 = vadd.f32 0.0, %v797
    %v799 = vpop.f32.mrf.mxu0
    %800 = vmatprep.mubr.f32.mxu0 %v675
    %801 = vmatmul.mubr.f32.gmra.mxu0 %v674
    %v802 = vpop.f32.mrf.mxu0
    %v803 = vadd.f32 0.0, %v802
    %v804 = vpop.f32.mrf.mxu0
    %805 = vmatprep.mubr.f32.mxu0 %v677
    %806 = vmatmul.mubr.f32.gmra.mxu0 %v676
    %v807 = vpop.f32.mrf.mxu0
    %v808 = vadd.f32 0.0, %v807
    %v809 = vpop.f32.mrf.mxu0
    %810 = vmatprep.mubr.f32.mxu0 %v679
    %811 = vmatmul.mubr.f32.gmra.mxu0 %v678
    %v812 = vpop.f32.mrf.mxu0
    %v813 = vadd.f32 0.0, %v812
    %v814 = vpop.f32.mrf.mxu0
    %815 = vmatprep.mubr.f32.mxu0 %v681
    %816 = vmatmul.mubr.f32.gmra.mxu0 %v680
    %v817 = vpop.f32.mrf.mxu0
    %v818 = vadd.f32 0.0, %v817
    %v819 = vpop.f32.mrf.mxu0
    %820 = vmatprep.mubr.f32.mxu0 %v683
    %821 = vmatmul.mubr.f32.gmra.mxu0 %v682
    %v822 = vpop.f32.mrf.mxu0
    %v823 = vadd.f32 0.0, %v822
    %v824 = vpop.f32.mrf.mxu0
    %825 = vmatprep.mubr.f32.mxu0 %v685
    %826 = vmatmul.mubr.f32.gmra.mxu0 %v684
    %v827 = vpop.f32.mrf.mxu0
    %v828 = vadd.f32 0.0, %v827
    %v829 = vpop.f32.mrf.mxu0
    %830 = vdwg.mxu0
    %831 = vst [vmem:[#allocation10] sm:$0xff] %v654
    %832 = vst [vmem:[#allocation10 + $0x8] sm:$0xff] %v655
    %833 = vst [vmem:[#allocation10 + $0x10] sm:$0xff] %v656
    %834 = vst [vmem:[#allocation10 + $0x18] sm:$0xff] %v657
    %835 = vst [vmem:[#allocation10 + $0x20] sm:$0xff] %v658
    %836 = vst [vmem:[#allocation10 + $0x28] sm:$0xff] %v659
    %837 = vst [vmem:[#allocation10 + $0x30] sm:$0xff] %v660
    %838 = vst [vmem:[#allocation10 + $0x38] sm:$0xff] %v661
    %839 = vst [vmem:[#allocation10 + $0x40] sm:$0xff] %v662
    %840 = vst [vmem:[#allocation10 + $0x48] sm:$0xff] %v663
    %841 = vst [vmem:[#allocation10 + $0x50] sm:$0xff] %v664
    %842 = vst [vmem:[#allocation10 + $0x58] sm:$0xff] %v665
    %843 = vst [vmem:[#allocation10 + $0x60] sm:$0xff] %v666
    %844 = vst [vmem:[#allocation10 + $0x68] sm:$0xff] %v667
    %845 = vst [vmem:[#allocation10 + $0x70] sm:$0xff] %v668
    %846 = vst [vmem:[#allocation10 + $0x78] sm:$0xff] %v669
    %847 = vst [vmem:[#allocation10 + $0x80] sm:$0xff] %v670
    %848 = vst [vmem:[#allocation10 + $0x88] sm:$0xff] %v671
    %849 = vst [vmem:[#allocation10 + $0x90] sm:$0xff] %v672
    %850 = vst [vmem:[#allocation10 + $0x98] sm:$0xff] %v673
    %851 = vst [vmem:[#allocation10 + $0xa0] sm:$0xff] %v674
    %852 = vst [vmem:[#allocation10 + $0xa8] sm:$0xff] %v675
    %853 = vst [vmem:[#allocation10 + $0xb0] sm:$0xff] %v676
    %854 = vst [vmem:[#allocation10 + $0xb8] sm:$0xff] %v677
    %855 = vst [vmem:[#allocation10 + $0xc0] sm:$0xff] %v678
    %856 = vst [vmem:[#allocation10 + $0xc8] sm:$0xff] %v679
    %857 = vst [vmem:[#allocation10 + $0xd0] sm:$0xff] %v680
    %858 = vst [vmem:[#allocation10 + $0xd8] sm:$0xff] %v681
    %859 = vst [vmem:[#allocation10 + $0xe0] sm:$0xff] %v682
    %860 = vst [vmem:[#allocation10 + $0xe8] sm:$0xff] %v683
    %861 = vst [vmem:[#allocation10 + $0xf0] sm:$0xff] %v684
    %862 = vst [vmem:[#allocation10 + $0xf8] sm:$0xff] %v685
    %v863 = vsub.f32 %v753, %v60
    %v864 = vsub.f32 %v758, %v61
    %v865 = vsub.f32 %v763, %v62
    %v866 = vsub.f32 %v768, %v63
    %v867 = vsub.f32 %v773, %v64
    %v868 = vsub.f32 %v778, %v65
    %v869 = vsub.f32 %v783, %v66
    %v870 = vsub.f32 %v788, %v67
    %v871 = vsub.f32 %v793, %v68
    %v872 = vsub.f32 %v798, %v69
    %v873 = vsub.f32 %v803, %v70
    %v874 = vsub.f32 %v808, %v71
    %v875 = vsub.f32 %v813, %v72
    %v876 = vsub.f32 %v818, %v73
    %v877 = vsub.f32 %v823, %v74
    %v878 = vsub.f32 %v828, %v75
    %v879 = vadd.f32 %v60, %v863
    %v880 = vadd.f32 %v61, %v864
    %v881 = vadd.f32 %v62, %v865
    %v882 = vadd.f32 %v63, %v866
    %v883 = vadd.f32 %v64, %v867
    %v884 = vadd.f32 %v65, %v868
    %v885 = vadd.f32 %v66, %v869
    %v886 = vadd.f32 %v67, %v870
    %v887 = vadd.f32 %v68, %v871
    %v888 = vadd.f32 %v69, %v872
    %v889 = vadd.f32 %v70, %v873
    %v890 = vadd.f32 %v71, %v874
    %v891 = vadd.f32 %v72, %v875
    %v892 = vadd.f32 %v73, %v876
    %v893 = vadd.f32 %v74, %v877
    %v894 = vadd.f32 %v75, %v878
    %895 = vst [vmem:[#allocation9] sm:$0xff] %v879
    %896 = vst [vmem:[#allocation9 + $0x8] sm:$0xff] %v880
    %897 = vst [vmem:[#allocation9 + $0x10] sm:$0xff] %v881
    %898 = vst [vmem:[#allocation9 + $0x18] sm:$0xff] %v882
    %899 = vst [vmem:[#allocation9 + $0x20] sm:$0xff] %v883
    %900 = vst [vmem:[#allocation9 + $0x28] sm:$0xff] %v884
    %901 = vst [vmem:[#allocation9 + $0x30] sm:$0xff] %v885
    %902 = vst [vmem:[#allocation9 + $0x38] sm:$0xff] %v886
    %903 = vst [vmem:[#allocation9 + $0x40] sm:$0xff] %v887
    %904 = vst [vmem:[#allocation9 + $0x48] sm:$0xff] %v888
    %905 = vst [vmem:[#allocation9 + $0x50] sm:$0xff] %v889
    %906 = vst [vmem:[#allocation9 + $0x58] sm:$0xff] %v890
    %907 = vst [vmem:[#allocation9 + $0x60] sm:$0xff] %v891
    %908 = vst [vmem:[#allocation9 + $0x68] sm:$0xff] %v892
    %909 = vst [vmem:[#allocation9 + $0x70] sm:$0xff] %v893
    %910 = vst [vmem:[#allocation9 + $0x78] sm:$0xff] %v894
    %v911 = vld [vmem:[#allocation2] sm:$0x1]
    %v912 = vmul.f32 %v863, %v863
    %v913 = vmul.f32 %v864, %v864
    %v914 = vmul.f32 %v865, %v865
    %v915 = vmul.f32 %v866, %v866
    %v916 = vmul.f32 %v867, %v867
    %v917 = vmul.f32 %v868, %v868
    %v918 = vmul.f32 %v869, %v869
    %v919 = vmul.f32 %v870, %v870
    %v920 = vmul.f32 %v871, %v871
    %v921 = vmul.f32 %v872, %v872
    %v922 = vmul.f32 %v873, %v873
    %v923 = vmul.f32 %v874, %v874
    %v924 = vmul.f32 %v875, %v875
    %v925 = vmul.f32 %v876, %v876
    %v926 = vmul.f32 %v877, %v877
    %v927 = vmul.f32 %v878, %v878
    %v928 = vadd.f32 %v912, %v913
    %v929 = vadd.f32 %v928, %v914
    %v930 = vadd.f32 %v929, %v915
    %v931 = vadd.f32 %v930, %v916
    %v932 = vadd.f32 %v931, %v917
    %v933 = vadd.f32 %v932, %v918
    %v934 = vadd.f32 %v933, %v919
    %v935 = vadd.f32 %v934, %v920
    %v936 = vadd.f32 %v935, %v921
    %v937 = vadd.f32 %v936, %v922
    %v938 = vadd.f32 %v937, %v923
    %v939 = vadd.f32 %v938, %v924
    %v940 = vadd.f32 %v939, %v925
    %v941 = vadd.f32 %v940, %v926
    %v942 = vadd.f32 %v941, %v927
    %943 = vadd.xlane.f32.xlu0 %v942
    %v944 = vpop.xlane.xlu0 %943
    %v945 = vrot.slane %v944, 4
    %v946 = vadd.f32 %v944, %v945
    %v947 = vrot.slane %v946, 2
    %v948 = vadd.f32 %v946, %v947
    %v949 = vrot.slane %v948, 1
    %v950 = vadd.f32 %v948, %v949
    %s951 = vtos %v950
    %v952 = vstv %s951
    %v953 = vadd.f32 %v911, %v952
    %vm954 = vcmask 0
    %955 = vst.msk [vmem:[#allocation2] sm:$0x1] %vm954, %v953
    %v956 = vld [vmem:[#allocation3] sm:$0x3]
    %v957 = vadd.f32 %v654, %v656
    %v958 = vadd.f32 %v957, %v658
    %v959 = vadd.f32 %v958, %v660
    %v960 = vadd.f32 %v959, %v662
    %v961 = vadd.f32 %v960, %v664
    %v962 = vadd.f32 %v961, %v666
    %v963 = vadd.f32 %v962, %v668
    %v964 = vadd.f32 %v963, %v670
    %v965 = vadd.f32 %v964, %v672
    %v966 = vadd.f32 %v965, %v674
    %v967 = vadd.f32 %v966, %v676
    %v968 = vadd.f32 %v967, %v678
    %v969 = vadd.f32 %v968, %v680
    %v970 = vadd.f32 %v969, %v682
    %v971 = vadd.f32 %v970, %v684
    %v972 = vrot.slane %v971, 4
    %v973 = vadd.f32 %v971, %v972
    %v974 = vrot.slane %v973, 2
    %v975 = vadd.f32 %v973, %v974
    %v976 = vrot.slane %v975, 1
    %v977 = vadd.f32 %v975, %v976
    %v978 = vadd.f32 %v655, %v657
    %v979 = vadd.f32 %v978, %v659
    %v980 = vadd.f32 %v979, %v661
    %v981 = vadd.f32 %v980, %v663
    %v982 = vadd.f32 %v981, %v665
    %v983 = vadd.f32 %v982, %v667
    %v984 = vadd.f32 %v983, %v669
    %v985 = vadd.f32 %v984, %v671
    %v986 = vadd.f32 %v985, %v673
    %v987 = vadd.f32 %v986, %v675
    %v988 = vadd.f32 %v987, %v677
    %v989 = vadd.f32 %v988, %v679
    %v990 = vadd.f32 %v989, %v681
    %v991 = vadd.f32 %v990, %v683
    %v992 = vadd.f32 %v991, %v685
    %v993 = vrot.slane %v992, 4
    %v994 = vadd.f32 %v992, %v993
    %v995 = vrot.slane %v994, 2
    %v996 = vadd.f32 %v994, %v995
    %v997 = vrot.slane %v996, 1
    %v998 = vadd.f32 %v996, %v997
    %v1001 = vcombine.low %v977, %v998
    %v1003 = vunpack.c.l.s4 1966171168
    %v1004 = vunpack.c.0.s8 %v1003
    %v1005 = vlaneseq
    %v1006 = vshrl.u32 %v1005, 7
    %v1007 = vsub.s32 %v1004, %v1006
    %v1008 = vrot.slane %v1001, %v1007
    %v1010 = vunpack.c.l.s4 1966171168
    %v1011 = vunpack.c.0.s8 %v1010
    %v1012 = vlaneseq
    %v1013 = vshrl.u32 %v1012, 7
    %v1014 = vsub.s32 %v1011, %v1013
    %v1015 = vrot.slane %v1008, %v1014
    %v1017 = vadd.f32 %v956, %v1015
    %v1018 = vlaneseq
    %vm1019 = vcmp.ge.s32.totalorder %v1018, 0
    %vm1020 = vcmp.lt.s32.totalorder %v1018, 256
    %vm1021 = vmand %vm1019, %vm1020
    %1022 = vst.msk [vmem:[#allocation3] sm:$0x3] %vm1021, %v1017
    // Predicated region
    $region26: #{tpu_custom_call.1} parent=1 // pred_check
      %p1023 = pneg %p49
    $region27: #{tpu_custom_call.1} parent=1 // pred_check_branch
      %1025 = sbr.rel (%p1023) target = $region29
    $region28: #{tpu_custom_call.1} parent=1 // pred_region
      %v1026 = vld [vmem:[#allocation2] sm:$0x1]
      %v1027 = vrcp.pop 16384.0
      %v1028 = vmul.f32 %v1026, %v1027
      %v1029 = vmul.f32 %v1028, 1.25
      %1030 = vst.msk [vmem:[#allocation12] sm:$0x1] %vm954, %v1029
      %v1031 = vld [vmem:[#allocation3] sm:$0x3]
      %v1032 = vrcp.pop 128.0
      %v1033 = vmul.f32 %v1031, %v1032
      %v1034 = vadd.f32 %v1033, 1e-10
      %v1035 = vlog2.pop %v1034
      %v1036 = vmul.f32 %v1035, 0.6931472
      %v1037 = vmul.f32 %v1033, %v1036
      %v1039 = vlaneseq
      %v1040 = vshrl.u32 %v1039, 7
      %v1041 = vsub.s32 0, %v1040
      %v1042 = vrot.slane %v1037, %v1041
      %v1043 = vlaneseq
      %v1044 = vshrl.u32 %v1043, 7
      %v1045 = vsub.s32 1, %v1044
      %v1046 = vrot.slane %v1037, %v1045
      %vm1049 = vcmask 1040384
      %v1050 = vsel %vm1049, %v1042, 0.0
      %v1051 = vsel %vm1049, %v1046, 0.0
      %v1052 = vadd.f32 %v1050, %v1051
      %1053 = vadd.xlane.f32.xlu0 %v1052
      %v1054 = vpop.xlane.xlu0 %1053
      %v1055 = vsub.f32 0.0, %v1054
      %v1056 = vmul.f32 %v1055, 1.442695
      %v1057 = vpow.pop %v1056
      %1058 = vst.msk [vmem:[#allocation13] sm:$0x1] %vm954, %v1057
    $region29: #{tpu_custom_call.1} parent=1 // pred_fallthru
      _
    // Predicated region
    $region30: #{tpu_custom_call.1} parent=1 // pred_check
      _
    $region31: #{tpu_custom_call.1} parent=1 // pred_check_branch
      %1060 = sbr.rel (0) target = $region33
    $region32: #{tpu_custom_call.1} parent=1 // pred_region
      %s1062 = ssub.s32 2048, 2048
      %1063 = vsyncadd [#allocation6], %s1062
      %s1064 = sshll.u32 [#allocation9], 4
      %s1065 = int_to_ptr.vmem [resolvable:$true] %s1064
      %1070 = dma.vmem_to_hbm [thread:$0]  %s1065, 2048, %s3, [#allocation6], 128, 128, 8
    $region33: #{tpu_custom_call.1} parent=1 // pred_fallthru
      _
    // Predicated region
    $region34: #{tpu_custom_call.1} parent=1 // pred_check
      _
    $region35: #{tpu_custom_call.1} parent=1 // pred_check_branch
      %1072 = sbr.rel (0) target = $region37
    $region36: #{tpu_custom_call.1} parent=1 // pred_region
      %s1074 = ssub.s32 4096, 4096
      %1075 = vsyncadd [#allocation11], %s1074
      %s1076 = sshll.u32 [#allocation10], 4
      %s1077 = int_to_ptr.vmem [resolvable:$true] %s1076
      %1082 = dma.vmem_to_hbm [thread:$0]  %s1077, 4096, %s4, [#allocation11], 256, 256, 16
    $region37: #{tpu_custom_call.1} parent=1 // pred_fallthru
      _
    // Predicated region
    $region38: #{tpu_custom_call.1} parent=1 // pred_check
      _
    $region39: #{tpu_custom_call.1} parent=1 // pred_check_branch
      %1084 = sbr.rel (0) target = $region41
    $region40: #{tpu_custom_call.1} parent=1 // pred_region
      %s1086 = ssub.s32 16, 16
      %1087 = vsyncadd [#allocation11], %s1086
      %s1089 = sshll.u32 [#allocation12], 4
      %s1090 = int_to_ptr.vmem [resolvable:$true] %s1089
      %1092 = dma.vmem_to_hbm [thread:$0]  %s1090, 16, %s5, [#allocation11]
    $region41: #{tpu_custom_call.1} parent=1 // pred_fallthru
      _
    // Predicated region
    $region42: #{tpu_custom_call.1} parent=1 // pred_check
      _
    $region43: #{tpu_custom_call.1} parent=1 // pred_check_branch
      %1094 = sbr.rel (0) target = $region45
    $region44: #{tpu_custom_call.1} parent=1 // pred_region
      %s1096 = ssub.s32 16, 16
      %1097 = vsyncadd [#allocation14], %s1096
      %s1099 = sshll.u32 [#allocation13], 4
      %s1100 = int_to_ptr.vmem [resolvable:$true] %s1099
      %1102 = dma.vmem_to_hbm [thread:$0]  %s1100, 16, %s6, [#allocation14]
    $region45: #{tpu_custom_call.1} parent=1 // pred_fallthru
      _
    // Predicated region
    $region46: #{tpu_custom_call.1} parent=1 // pred_check
      _
    $region47: #{tpu_custom_call.1} parent=1 // pred_check_branch
      %1104 = sbr.rel (0) target = $region49
    $region48: #{tpu_custom_call.1} parent=1 // pred_region
      %1105 = dma.done [#allocation6], 2048
    $region49: #{tpu_custom_call.1} parent=1 // pred_fallthru
      _
    // Predicated region
    $region50: #{tpu_custom_call.1} parent=1 // pred_check
      _
    $region51: #{tpu_custom_call.1} parent=1 // pred_check_branch
      %1107 = sbr.rel (0) target = $region53
    $region52: #{tpu_custom_call.1} parent=1 // pred_region
      %1108 = dma.done [#allocation11], 4096
    $region53: #{tpu_custom_call.1} parent=1 // pred_fallthru
      _
    // Predicated region
    $region54: #{tpu_custom_call.1} parent=1 // pred_check
      _
    $region55: #{tpu_custom_call.1} parent=1 // pred_check_branch
      %1110 = sbr.rel (0) target = $region57
    $region56: #{tpu_custom_call.1} parent=1 // pred_region
      %1111 = dma.done [#allocation11], 16
    $region57: #{tpu_custom_call.1} parent=1 // pred_fallthru
      _
    // Predicated region
    $region58: #{tpu_custom_call.1} parent=1 // pred_check
      _
    $region59: #{tpu_custom_call.1} parent=1 // pred_check_branch
      %1113 = sbr.rel (0) target = $region61
    $region60: #{tpu_custom_call.1} parent=1 // pred_region
      %1114 = dma.done [#allocation14], 16
    $region61: #{tpu_custom_call.1} parent=1 // pred_fallthru
      _
    %1115 = vsyncpa [#allocation5], 1
    %1116 = vsyncpa [#allocation8], 1
    %1117 = vsyncpa [#allocation6], 1
    %1118 = vsyncpa [#allocation11], 1
    %1119 = vsyncpa [#allocation14], 1

</llo_original>
